<compile_context>
chip_gen: v5e
topology: v5e:2x2
jax: 0.10.0
libtpu: 0.0.40
codegen_flags: <defaults>
</compile_context>

<pallas_src>
import functools
from collections import namedtuple

import jax
import jax.numpy as jnp
from jax.experimental import pallas as pl
from jax.experimental.pallas import tpu as pltpu


_Budgets = namedtuple(
    "_Budgets", ["vmem_limit", "input_budget", "step_target", "small_vmem"])

# itemsize -> sublane packing (second-to-last block dim alignment)
_SUBLANE_ALIGN = {8: 8, 4: 8, 2: 16, 1: 32}


def _round_up(x, m):
    return ((x + m - 1) // m) * m


def _budgets():
    """Per-generation VMEM budgets: (vmem_limit, double-buffered input budget,
    target input bytes per grid step, small-VMEM/v7x-class flag)."""
    vmem_bytes = 128 * 1024 * 1024
    try:
        info = pltpu.get_tpu_info()
        vmem_bytes = int(getattr(info, "vmem_capacity_bytes", vmem_bytes))
    except Exception:
        pass
    if vmem_bytes <= 64 * 1024 * 1024:
        # v7x-class: only 64 MiB VMEM per TensorCore, but ~3.2 TB/s HBM ->
        # want big per-step DMAs while leaving headroom for 2x inputs+out+acc.
        return _Budgets(48 * 1024 * 1024, 20 * 1024 * 1024,
                        8 * 1024 * 1024, True)
    # v5e / v6e: 128 MiB physical VMEM.
    return _Budgets(64 * 1024 * 1024, 28 * 1024 * 1024,
                    6 * 1024 * 1024, False)


def _balanced_tile(total, max_tile, align):
    """Largest tile <= ~max_tile, multiple of `align`, splitting `total` into
    near-equal tiles (minimises zero-padding)."""
    max_tile = max(align, (max_tile // align) * align)
    if total <= max_tile:
        return _round_up(total, align)
    num = -(-total // max_tile)              # ceil(total / max_tile)
    return _round_up(-(-total // num), align)


# ---------------------------------------------------------------------------
# Masked branch: out[b, f] = sum_n seq[b, n, f] * msk[b, n] * (1 / sum(msk))
# Grid: (B tiles [parallel], F tiles [parallel], N tiles [arbitrary, reduce])
# Scalar prefetch: (1,) f32 = 1 / global mask sum (computed in the wrapper).
# ---------------------------------------------------------------------------
def _masked_readout_kernel(inv_ref, seq_ref, msk_ref, out_ref, acc_ref):
    n = pl.program_id(2)

    @pl.when(n == 0)
    def _init():
        acc_ref[...] = jnp.zeros_like(acc_ref)

    # (tile_b, tile_n, tile_f) * (tile_b, tile_n, 1): cheap lane-broadcast
    # multiply at the input dtype; reduce over N accumulating in f32.
    acc_ref[...] += jnp.sum(seq_ref[...] * msk_ref[...], axis=1,
                            dtype=jnp.float32)

    @pl.when(n == pl.num_programs(2) - 1)
    def _finalize():
        # Global 1/sum(msk) lives in SMEM (scalar prefetch); one scalar mul.
        out_ref[...] = (acc_ref[...] * inv_ref[0]).astype(out_ref.dtype)


def _masked_tiles(B, N, F, itemsize, budgets):
    step_target = min(budgets.step_target, budgets.input_budget // 2)
    if itemsize < 4:
        # bf16/int8 tiles get upcast in-register on v5e; keep steps moderate.
        step_target = min(step_target, 4 * 1024 * 1024)
    n_align = _SUBLANE_ALIGN[itemsize]

    tile_f = _balanced_tile(F, 2048, 128)    # prefer full (padded) F
    F_pad = _round_up(F, tile_f)

    def row_bytes(tf):
        # VMEM bytes of one (b, n) element: seq row + mask lane-padded to 128.
        return tf * itemsize + 128 * itemsize

    # B tiling: one full-B tile when that still leaves room for a decent N
    # tile; otherwise tile B (bounds VMEM for large B, adds a parallel axis).
    if B * row_bytes(tile_f) * n_align <= step_target:
        tile_b, B_pad = B, B
    else:
        b_align = n_align                    # out block is (tile_b, tile_f)
        max_tb = max(b_align, step_target // (row_bytes(tile_f) * n_align))
        tile_b = _balanced_tile(B, max_tb, b_align)
        B_pad = _round_up(B, tile_b)

    # v7x-class: guarantee >1 parallel grid step for the two TensorCores.
    if (budgets.small_vmem
            and (B_pad // tile_b) * (F_pad // tile_f) == 1
            and tile_f % 256 == 0):
        tile_f //= 2

    max_tn = max(n_align, step_target // (tile_b * row_bytes(tile_f)))
    tile_n = _balanced_tile(N, max_tn, n_align)
    N_pad = _round_up(N, tile_n)
    return tile_b, B_pad, tile_n, N_pad, tile_f, F_pad


def _masked_readout(seq, msk, budgets):
    B, N, F = seq.shape
    itemsize = jnp.dtype(seq.dtype).itemsize
    tile_b, B_pad, tile_n, N_pad, tile_f, F_pad = _masked_tiles(
        B, N, F, itemsize, budgets)

    # Global denominator (torch sums the whole mask) -> one SMEM f32 scalar.
    # Computed on the original (unpadded, uncast) mask in f32.
    inv_denom = (1.0 / jnp.sum(msk, dtype=jnp.float32)).reshape(1)

    msk = msk.astype(seq.dtype)              # avoid bf16*f32 -> f32 promotion
    if (B_pad, N_pad, F_pad) != (B, N, F):
        # Zero padding contributes nothing to the numerator.
        seq = jnp.pad(seq, ((0, B_pad - B), (0, N_pad - N), (0, F_pad - F)))
        msk = jnp.pad(msk, ((0, B_pad - B), (0, N_pad - N)))
    msk3 = msk.reshape(B_pad, N_pad, 1)      # trailing lane dim -> broadcast

    grid = (B_pad // tile_b, F_pad // tile_f, N_pad // tile_n)
    out = pl.pallas_call(
        _masked_readout_kernel,
        out_shape=jax.ShapeDtypeStruct((B_pad, F_pad), seq.dtype),
        grid_spec=pltpu.PrefetchScalarGridSpec(
            num_scalar_prefetch=1,           # inv_denom -> SMEM
            grid=grid,
            in_specs=[
                pl.BlockSpec((tile_b, tile_n, tile_f),
                             lambda b, f, n, inv: (b, n, f)),
                pl.BlockSpec((tile_b, tile_n, 1),
                             lambda b, f, n, inv: (b, n, 0)),
            ],
            out_specs=pl.BlockSpec((tile_b, tile_f),
                                   lambda b, f, n, inv: (b, f)),
            scratch_shapes=[pltpu.VMEM((tile_b, tile_f), jnp.float32)],
        ),
        compiler_params=pltpu.CompilerParams(
            dimension_semantics=("parallel", "parallel", "arbitrary"),
            vmem_limit_bytes=budgets.vmem_limit,
        ),
    )(inv_denom, seq, msk3)
    return out[:B, :F]


# ---------------------------------------------------------------------------
# msk=None branch: out[n, f] = mean_b seq[b, n, f]
# Grid: (N tiles [parallel], F tiles [parallel], B tiles [arbitrary, reduce])
# ---------------------------------------------------------------------------
def _mean_readout_kernel_inplace(seq_ref, out_ref, *, inv_b):
    # f32 output: accumulate directly into the resident output block.
    b = pl.program_id(2)

    @pl.when(b == 0)
    def _init():
        out_ref[...] = jnp.zeros(out_ref.shape, out_ref.dtype)

    out_ref[...] += jnp.sum(seq_ref[...], axis=0, dtype=jnp.float32)

    @pl.when(b == pl.num_programs(2) - 1)
    def _finalize():
        out_ref[...] = out_ref[...] * inv_b


def _mean_readout_kernel_scratch(seq_ref, out_ref, acc_ref, *, inv_b):
    # Non-f32 output: keep an f32 accumulator scratch.
    b = pl.program_id(2)

    @pl.when(b == 0)
    def _init():
        acc_ref[...] = jnp.zeros_like(acc_ref)

    acc_ref[...] += jnp.sum(seq_ref[...], axis=0, dtype=jnp.float32)

    @pl.when(b == pl.num_programs(2) - 1)
    def _finalize():
        out_ref[...] = (acc_ref[...] * inv_b).astype(out_ref.dtype)


def _mean_readout(seq, budgets):
    B, N, F = seq.shape
    itemsize = jnp.dtype(seq.dtype).itemsize
    step_target = min(budgets.step_target, budgets.input_budget // 2)
    if itemsize < 4:
        step_target = min(step_target, 4 * 1024 * 1024)
    n_align = _SUBLANE_ALIGN[itemsize]

    tile_f = _balanced_tile(F, 2048, 128)
    F_pad = _round_up(F, tile_f)
    tile_b = _balanced_tile(B, 8, 1)         # reduction axis (leading dim)
    B_pad = _round_up(B, tile_b)
    max_tn = max(n_align, step_target // (tile_b * tile_f * itemsize))
    tile_n = _balanced_tile(N, max_tn, n_align)
    N_pad = _round_up(N, tile_n)

    if (B_pad, N_pad, F_pad) != (B, N, F):
        # Zero-padded batches contribute nothing; divide by the true B.
        seq = jnp.pad(seq, ((0, B_pad - B), (0, N_pad - N), (0, F_pad - F)))

    inv_b = 1.0 / B
    if jnp.dtype(seq.dtype) == jnp.float32:
        kernel = functools.partial(_mean_readout_kernel_inplace, inv_b=inv_b)
        scratch = []
    else:
        kernel = functools.partial(_mean_readout_kernel_scratch, inv_b=inv_b)
        scratch = [pltpu.VMEM((tile_n, tile_f), jnp.float32)]

    grid = (N_pad // tile_n, F_pad // tile_f, B_pad // tile_b)
    out = pl.pallas_call(
        kernel,
        out_shape=jax.ShapeDtypeStruct((N_pad, F_pad), seq.dtype),
        grid_spec=pltpu.PrefetchScalarGridSpec(
            num_scalar_prefetch=0,
            grid=grid,
            in_specs=[
                pl.BlockSpec((tile_b, tile_n, tile_f),
                             lambda n, f, b: (b, n, f)),
            ],
            out_specs=pl.BlockSpec((tile_n, tile_f), lambda n, f, b: (n, f)),
            scratch_shapes=scratch,
        ),
        compiler_params=pltpu.CompilerParams(
            dimension_semantics=("parallel", "parallel", "arbitrary"),
            vmem_limit_bytes=budgets.vmem_limit,
        ),
    )(seq)
    return out[:N, :F]


# ---------------------------------------------------------------------------
# Public wrapper
# ---------------------------------------------------------------------------
def _reference(seq, msk=None):
    if msk is None:
        return jnp.mean(seq, axis=0)
    m = msk[..., None]
    return jnp.sum(seq * m, axis=1) / jnp.sum(m)


def avg_readout(seq, msk=None, *, min_pallas_bytes=2 * 1024 * 1024):
    """Pallas implementation of AvgReadout.forward(seq, msk)."""
    # Tiny inputs: pad/launch/slice overhead dominates -> let XLA fuse it.
    if seq.size * jnp.dtype(seq.dtype).itemsize < min_pallas_bytes:
        return _reference(seq, msk)
    budgets = _budgets()
    if msk is None:
        return _mean_readout(seq, budgets)
    B, N, _ = seq.shape
    assert msk.shape == (B, N)
    return _masked_readout(seq, msk, budgets)


if __name__ == "__main__":
    key = jax.random.PRNGKey(0)
    k1, k2, k3, k4, k5, k6 = jax.random.split(key, 6)

    # Small shapes consistent with the module: (batch, nodes, features).
    B, N, F = 2, 8, 32
    seq = jax.random.normal(k1, (B, N, F), dtype=jnp.float32)
    msk = (jax.random.uniform(k2, (B, N)) > 0.3).astype(jnp.float32)

    # min_pallas_bytes=0 forces the Pallas path even at tiny test shapes.
    out_masked = avg_readout(seq, msk, min_pallas_bytes=0)
    out_mean = avg_readout(seq, None, min_pallas_bytes=0)
    jax.block_until_ready((out_masked, out_mean))
    assert out_masked.shape == (B, F)
    assert out_mean.shape == (N, F)
    assert jnp.allclose(out_masked, _reference(seq, msk), atol=1e-5, rtol=1e-5)
    assert jnp.allclose(out_mean, _reference(seq, None), atol=1e-5, rtol=1e-5)

    # Non-aligned shape: exercises the B/N/F padding + slicing paths.
    B2, N2, F2 = 3, 20, 48
    seq2 = jax.random.normal(k3, (B2, N2, F2), dtype=jnp.float32)
    msk2 = (jax.random.uniform(k4, (B2, N2)) > 0.5).astype(jnp.float32)
    o2m = avg_readout(seq2, msk2, min_pallas_bytes=0)
    o2u = avg_readout(seq2, None, min_pallas_bytes=0)
    jax.block_until_ready((o2m, o2u))
    assert jnp.allclose(o2m, _reference(seq2, msk2), atol=1e-5, rtol=1e-5)
    assert jnp.allclose(o2u, _reference(seq2, None), atol=1e-5, rtol=1e-5)

    # Larger shape on the default path: multi-step reduction + large tiles.
    B3, N3, F3 = 4, 2048, 256
    seq_l = jax.random.normal(k5, (B3, N3, F3), dtype=jnp.float32)
    msk_l = (jax.random.uniform(k6, (B3, N3)) > 0.5).astype(jnp.float32)
    o3m = avg_readout(seq_l, msk_l)
    o3u = avg_readout(seq_l, None)
    jax.block_until_ready((o3m, o3u))
    assert jnp.allclose(o3m, _reference(seq_l, msk_l), atol=1e-5, rtol=1e-5)
    assert jnp.allclose(o3u, _reference(seq_l, None), atol=1e-5, rtol=1e-5)

    # Tiny-input fast path (jnp reference) still matches.
    assert jnp.allclose(avg_readout(seq, msk), _reference(seq, msk),
                        atol=1e-5, rtol=1e-5)

    print("KERNEL_OK")
</pallas_src>

<mosaic_0001>
module attributes {stable_mosaic.version = 11 : i64} {
  func.func @_masked_readout_kernel(%arg0: i32, %arg1: i32, %arg2: i32, %arg3: memref<1xf32, #tpu.memory_space<smem>>, %arg4: memref<2x8x128xf32, #tpu.memory_space<vmem>>, %arg5: memref<2x8x1xf32, #tpu.memory_space<vmem>>, %arg6: memref<2x128xf32, #tpu.memory_space<vmem>>, %arg7: memref<2x128xf32, #tpu.memory_space<vmem>>) attributes {dimension_semantics = [#tpu.dimension_semantics<parallel>, #tpu.dimension_semantics<parallel>, #tpu.dimension_semantics<arbitrary>], iteration_bounds = array<i64: 1, 1, 1>, scalar_prefetch = 1 : i64, scratch_operands = 1 : i64, tpu.core_type = #tpu.core_type<tc>, window_params = [{transform_indices = @transform_0, window_bounds = array<i64: 2, 8, 128>}, {transform_indices = @transform_1, window_bounds = array<i64: 2, 8, 1>}, {transform_indices = @transform_2, window_bounds = array<i64: 2, 128>}]} {
    %c0_i32 = arith.constant 0 : i32
    %0 = arith.cmpi eq, %arg2, %c0_i32 : i32
    %1 = arith.extui %0 : i1 to i32
    %c0_i32_0 = arith.constant 0 : i32
    %2 = arith.cmpi ne, %1, %c0_i32_0 : i32
    scf.if %2 {
      %cst_12 = arith.constant 0.000000e+00 : f32
      %14 = vector.broadcast %cst_12 : f32 to vector<2x128xf32>
      %c0_13 = arith.constant 0 : index
      %c0_14 = arith.constant 0 : index
      %15 = vector.load %arg7[%c0_13, %c0_14] : memref<2x128xf32, #tpu.memory_space<vmem>>, vector<2x128xf32>
      tpu.vector_store %arg7[%c0_13, %c0_14], %14 {strides = array<i32>} : memref<2x128xf32, #tpu.memory_space<vmem>>, vector<2x128xf32>,
    } else {
    }
    %c0 = arith.constant 0 : index
    %c0_1 = arith.constant 0 : index
    %3 = vector.load %arg7[%c0, %c0_1] : memref<2x128xf32, #tpu.memory_space<vmem>>, vector<2x128xf32>
    %c0_2 = arith.constant 0 : index
    %c0_3 = arith.constant 0 : index
    %c0_4 = arith.constant 0 : index
    %4 = vector.load %arg4[%c0_2, %c0_3, %c0_4] : memref<2x8x128xf32, #tpu.memory_space<vmem>>, vector<2x8x128xf32>
    %c0_5 = arith.constant 0 : index
    %c0_6 = arith.constant 0 : index
    %c0_7 = arith.constant 0 : index
    %5 = vector.load %arg5[%c0_5, %c0_6, %c0_7] : memref<2x8x1xf32, #tpu.memory_space<vmem>>, vector<2x8x1xf32>
    %6 = vector.broadcast %5 : vector<2x8x1xf32> to vector<2x8x128xf32>
    %7 = arith.mulf %4, %6 : vector<2x8x128xf32>
    %cst = arith.constant dense<0.000000e+00> : vector<2x128xf32>
    %8 = vector.multi_reduction <add>, %7, %cst [1] : vector<2x8x128xf32> to vector<2x128xf32>
    %9 = arith.addf %3, %8 : vector<2x128xf32>
    %c0_8 = arith.constant 0 : index
    %c0_9 = arith.constant 0 : index
    %10 = vector.load %arg7[%c0_8, %c0_9] : memref<2x128xf32, #tpu.memory_space<vmem>>, vector<2x128xf32>
    tpu.vector_store %arg7[%c0_8, %c0_9], %9 {strides = array<i32>} : memref<2x128xf32, #tpu.memory_space<vmem>>, vector<2x128xf32>,
    %c0_i32_10 = arith.constant 0 : i32
    %11 = arith.cmpi eq, %arg2, %c0_i32_10 : i32
    %12 = arith.extui %11 : i1 to i32
    %c0_i32_11 = arith.constant 0 : i32
    %13 = arith.cmpi ne, %12, %c0_i32_11 : i32
    scf.if %13 {
      %c0_12 = arith.constant 0 : index
      %c0_13 = arith.constant 0 : index
      %14 = vector.load %arg7[%c0_12, %c0_13] : memref<2x128xf32, #tpu.memory_space<vmem>>, vector<2x128xf32>
      %c0_14 = arith.constant 0 : index
      %15 = memref.load %arg3[%c0_14] : memref<1xf32, #tpu.memory_space<smem>>
      %16 = vector.broadcast %15 : f32 to vector<2x128xf32>
      %17 = arith.mulf %14, %16 : vector<2x128xf32>
      %c0_15 = arith.constant 0 : index
      %c0_16 = arith.constant 0 : index
      %18 = vector.load %arg6[%c0_15, %c0_16] : memref<2x128xf32, #tpu.memory_space<vmem>>, vector<2x128xf32>
      tpu.vector_store %arg6[%c0_15, %c0_16], %17 {strides = array<i32>} : memref<2x128xf32, #tpu.memory_space<vmem>>, vector<2x128xf32>,
    } else {
    }
    return
  }
  func.func @transform_0(%arg0: i32, %arg1: i32, %arg2: i32, %arg3: memref<1xf32, #tpu.memory_space<smem>>) -> (i32, i32, i32) {
    %c0_i32 = arith.constant 0 : i32
    return %arg0, %arg2, %arg1 : i32, i32, i32
  }
  func.func @transform_1(%arg0: i32, %arg1: i32, %arg2: i32, %arg3: memref<1xf32, #tpu.memory_space<smem>>) -> (i32, i32, i32) {
    %c0_i32 = arith.constant 0 : i32
    %c0_i32_0 = arith.constant 0 : i32
    return %arg0, %arg2, %c0_i32 : i32, i32, i32
  }
  func.func @transform_2(%arg0: i32, %arg1: i32, %arg2: i32, %arg3: memref<1xf32, #tpu.memory_space<smem>>) -> (i32, i32) {
    %c0_i32 = arith.constant 0 : i32
    return %arg0, %arg1 : i32, i32
  }
}

</mosaic_0001>

<llo_original>
// kernel: tpu_custom_call.1
$region0: #{tpu_custom_call.1}
  #allocation0 [shape = 'u32[]', space=smem, size = 0x4, offset = 0x4, fixed_abs, tag = 'smem constant byte address 0x4 - core index']
  #allocation1 [shape = 'u32[72,128]{1,0:T(1,128)}', space=vmem, size = 0x9000, scoped, tag = 'internal scratch']
  #allocation2 [shape = 'f32[2,128]{1,0:T(2,128)}', space=vmem, size = 0x400, scoped, tag = 'scratch operand']
  #allocation3 [shape = 's32[1]{0}', space=sflag, size = 0x4, scoped, tag = 'scoped memory for tpu_custom_call.1']
  #allocation4 [shape = 'f32[1]{0:T(128)S(6)}', space=smem, size = 0x200, scoped, tag = 'prefetched SMEM operand 0']
  %s0 = inlined_call_operand.<no memory space> [shape: f32[1], index: 0, kind: input, shape index: {}]
  %s1 = inlined_call_operand.vmem [shape: f32[2,8,128], index: 1, kind: input, shape index: {}]
  %s2 = inlined_call_operand.vmem [shape: f32[2,8,1], index: 2, kind: input, shape index: {}]
  %s3 = inlined_call_operand.hbm [shape: f32[2,128], index: 3, kind: output, shape index: {}]
  %s4 = sld [smem:[#allocation0]]
  $region26: #{tpu_custom_call.1} parent=0
    _
  %s6 = ssub.s32 1, %s4
  %s7 = scalar_select 0, %s6, %s4
  %8 = sst [smem:[#allocation4]] %s0
  $region1: #{tpu_custom_call.1} parent=0
    #allocation5 [shape = 'u8[1024]{0}', space=vmem, size = 0x400, scoped, tag = 'output window, operand 0, single buffered']
    #allocation6 [shape = 's32[1]{0}', space=sflag, size = 0x4, scoped, tag = 'scoped memory for tpu_custom_call.1']
    %9 = vsyncpa [#allocation6], 0
    // Predicated region
    $region2: #{tpu_custom_call.1} parent=1 // pred_check
      _
    $region3: #{tpu_custom_call.1} parent=1 // pred_check_branch
      %11 = sbr.rel (0) target = $region5
    $region4: #{tpu_custom_call.1} parent=1 // pred_region
      _
    $region5: #{tpu_custom_call.1} parent=1 // pred_fallthru
      _
    // Predicated region
    $region6: #{tpu_custom_call.1} parent=1 // pred_check
      _
    $region7: #{tpu_custom_call.1} parent=1 // pred_check_branch
      %13 = sbr.rel (0) target = $region9
    $region8: #{tpu_custom_call.1} parent=1 // pred_region
      _
    $region9: #{tpu_custom_call.1} parent=1 // pred_fallthru
      _
    %p14 = scmp.eq.s32.totalorder 0, 0
    // Predicated region
    $region10: #{tpu_custom_call.1} parent=1 // pred_check
      %p15 = pneg %p14
    $region11: #{tpu_custom_call.1} parent=1 // pred_check_branch
      %17 = sbr.rel (%p15) target = $region13
    $region12: #{tpu_custom_call.1} parent=1 // pred_region
      %18 = vst [vmem:[#allocation2] sm:$0x3] 0.0
    $region13: #{tpu_custom_call.1} parent=1 // pred_fallthru
      _
    %v19 = vld [vmem:[#allocation2] sm:$0x3]
    %v20 = vld [vmem:[%s1] sm:$0xff]
    %v21 = vld [vmem:[%s1 + $0x8] sm:$0xff]
    %v22 = vld [vmem:[%s2] sm:$0xff]
    %v23 = vld [vmem:[%s2 + $0x8] sm:$0xff]
    %25 = vset.pattern.permute.xlu0 0
    %26 = vperm.xlu0 %25, %v22
    %v27 = vpop.permute.xlu0 %26
    %30 = vset.pattern.permute.xlu0 0
    %31 = vperm.xlu0 %30, %v23
    %v32 = vpop.permute.xlu0 %31
    %v34 = vmul.f32 %v20, %v27
    %v35 = vmul.f32 %v21, %v32
    %v36 = vrot.slane %v34, 4
    %v37 = vadd.f32 %v34, %v36
    %v38 = vrot.slane %v37, 2
    %v39 = vadd.f32 %v37, %v38
    %v40 = vrot.slane %v39, 1
    %v41 = vadd.f32 %v39, %v40
    %v42 = vrot.slane %v35, 4
    %v43 = vadd.f32 %v35, %v42
    %v44 = vrot.slane %v43, 2
    %v45 = vadd.f32 %v43, %v44
    %v46 = vrot.slane %v45, 1
    %v47 = vadd.f32 %v45, %v46
    %vm50 = vcmask 1041409
    %v51 = vsel %vm50, %v47, %v41
    %v53 = vadd.f32 %v19, %v51
    %54 = vst [vmem:[#allocation2] sm:$0x3] %v53
    // Predicated region
    $region14: #{tpu_custom_call.1} parent=1 // pred_check
      %p55 = pneg %p14
    $region15: #{tpu_custom_call.1} parent=1 // pred_check_branch
      %57 = sbr.rel (%p55) target = $region17
    $region16: #{tpu_custom_call.1} parent=1 // pred_region
      %v58 = vld [vmem:[#allocation2] sm:$0x3]
      %s59 = sld [smem:[#allocation4]]
      %v60 = vstv %s59
      %v61 = vmul.f32 %v58, %v60
      %62 = vst [vmem:[#allocation5] sm:$0x3] %v61
    $region17: #{tpu_custom_call.1} parent=1 // pred_fallthru
      _
    // Predicated region
    $region18: #{tpu_custom_call.1} parent=1 // pred_check
      _
    $region19: #{tpu_custom_call.1} parent=1 // pred_check_branch
      %64 = sbr.rel (0) target = $region21
    $region20: #{tpu_custom_call.1} parent=1 // pred_region
      %66 = vsyncadd [#allocation6], 0
      %s68 = sshll.u32 [#allocation5], 4
      %s69 = int_to_ptr.vmem [resolvable:$true] %s68
      %s70 = sshll.u32 %s3, 4
      %s71 = int_to_ptr.hbm [resolvable:$true] %s70
      %73 = dma.vmem_to_hbm [thread:$0]  %s69, 32, %s71, [#allocation6]
    $region21: #{tpu_custom_call.1} parent=1 // pred_fallthru
      _
    // Predicated region
    $region22: #{tpu_custom_call.1} parent=1 // pred_check
      _
    $region23: #{tpu_custom_call.1} parent=1 // pred_check_branch
      %75 = sbr.rel (0) target = $region25
    $region24: #{tpu_custom_call.1} parent=1 // pred_region
      %77 = dma.done [#allocation6], 32
    $region25: #{tpu_custom_call.1} parent=1 // pred_fallthru
      _
    %78 = vsyncpa [#allocation6], 1

</llo_original>
